<compile_context>
chip_gen: v5e
topology: v5e:2x2
jax: 0.10.0
libtpu: 0.0.40
codegen_flags: <defaults>
</compile_context>

<pallas_src>
import math
import numpy as np
import jax
import jax.numpy as jnp
from jax.experimental import pallas as pl
from jax.experimental.pallas import tpu as pltpu


TYPE2ID = {'object': 0, 'segment': 1, 'question': 2}


# ----------------------------------------------------------------------------
# Parameter construction (nn.Embedding default init: N(0, 1))
# ----------------------------------------------------------------------------
def make_token_type_embedding_table(token_type_num, d_model, key):
    return jax.random.normal(key, (token_type_num, d_model), dtype=jnp.float32)


# ----------------------------------------------------------------------------
# Kernel: broadcast one (1, tl) row over a (ts, tl) output block.
# Pure writeback; no per-step compute beyond the (hidden-under-DMA) broadcast.
# ----------------------------------------------------------------------------
def _broadcast_row_kernel(row_ref, out_ref):
    out_ref[...] = jnp.broadcast_to(row_ref[...], out_ref.shape).astype(out_ref.dtype)


# ----------------------------------------------------------------------------
# Tiling helpers
# ----------------------------------------------------------------------------
def _round_up(x, m):
    return ((x + m - 1) // m) * m


def _sublane_granule(dtype):
    # Native sublane tile height: 8 rows for 4-byte, 16 for 2-byte, 32 for 1-byte.
    return {4: 8, 2: 16, 1: 32}.get(jnp.dtype(dtype).itemsize, 8)


def _target_block_bytes():
    """Generation-aware output block size.

    Pure-writeback kernel: the only cost competing with the output DMA is the
    ~0.35 us per-grid-step overhead, so bigger blocks amortize it.  On
    v7x-class parts (64 MiB VMEM/TC, ~3.2 TB/s HBM) a 1 MiB block drains in
    ~0.3 us, so use 8 MiB there; 4 MiB elsewhere.  2 x block (double buffer)
    stays far under the 32 MiB scoped-VMEM limit on every generation.
    """
    try:
        info = pltpu.get_tpu_info()
        vmem = getattr(info, "vmem_capacity_bytes", None)
        if vmem is not None and vmem <= (64 << 20):   # v7x-class TensorCore
            return 8 << 20
    except Exception:
        pass
    return 4 << 20


def _choose_tiles(n_rows, lane_w, itemsize, granule, target_bytes):
    """Pick (row_tile, lane_tile):
       - lane_tile: multiple of 128 dividing lane_w (splits only for very wide rows),
       - row_tile: multiple of the sublane granule, block ~<= target_bytes,
         preferring a divisor of n_rows (no masked tail block)."""
    # ---- lane tile (only splits when even a granule-row block blows the budget)
    tl = lane_w
    if granule * lane_w * itemsize > target_bytes:
        max_lanes = max(128, (target_bytes // (granule * itemsize)) // 128 * 128)
        tl = min(lane_w, max_lanes)
        while lane_w % tl != 0 and tl > 128:
            tl -= 128                      # lane_w is a multiple of 128, so this terminates
    # ---- row tile
    max_rows = max(granule, (target_bytes // (tl * itemsize)) // granule * granule)
    ts = min(n_rows, max_rows)
    ts = max(granule, (ts // granule) * granule)
    if n_rows % ts != 0:
        # Prefer a divisor of n_rows (avoids a partial / masked tail block),
        # but never shrink the block below half the target size.
        t = ts
        for _ in range(64):
            if t < granule or t * 2 < ts:
                break
            if n_rows % t == 0:
                ts = t
                break
            t -= granule
    return ts, tl


# ----------------------------------------------------------------------------
# Wrapper: mirrors TokenTypeEmbeddings.forward
# ----------------------------------------------------------------------------
def token_type_embeddings_forward(embeddings, token_type, table, *,
                                  out_dtype=None, force_pallas=False,
                                  min_pallas_bytes=1 << 20):
    """embeddings: (B, seq, ...) -- only shape[1] is used (matches PyTorch).
    token_type: 'object' | 'segment' | 'question' (static Python string).
    table: (token_type_num, d_model).  Returns (seq, d_model)."""
    seq_len = embeddings.shape[1]
    _, d_model = table.shape
    tid = TYPE2ID[token_type]                          # static at trace time
    out_dtype = jnp.dtype(out_dtype) if out_dtype is not None else jnp.dtype(table.dtype)
    itemsize = out_dtype.itemsize

    # TODO(synk): the output is one constant row broadcast over seq; the real
    # win is fusing this broadcast into the consumer (the add with the main
    # embeddings) so the (seq, d_model) HBM write never happens at all.
    out_bytes = seq_len * d_model * itemsize
    if not force_pallas and out_bytes < min_pallas_bytes:
        # Small output: XLA's fused broadcast beats pallas_call launch overhead.
        return jnp.broadcast_to(table[tid].astype(out_dtype), (seq_len, d_model))

    # ---- lane-dense folded layout -------------------------------------------
    # Fold `fold` logical rows into the lane axis so the stored last dim is a
    # multiple of 128 (always unmasked full-width vst).  Row padding from the
    # fold / sublane granule is sliced off after the reshape (never masked stores).
    fold = 1 if d_model % 128 == 0 else math.lcm(d_model, 128) // d_model
    lane_w = fold * d_model
    granule = _sublane_granule(out_dtype)
    n_rows = _round_up(pl.cdiv(seq_len, fold), granule)

    ts, tl = _choose_tiles(n_rows, lane_w, itemsize, granule, _target_block_bytes())
    row_steps = pl.cdiv(n_rows, ts)
    lane_steps = lane_w // tl

    # Static row select + fold-tile + dtype cast done ONCE in the wrapper;
    # the kernel body is a pure broadcast store (no select, no cast work).
    row = table[tid].astype(out_dtype)
    if fold > 1:
        row = jnp.tile(row, fold)                       # (fold * d_model,)
    row = row.reshape(1, lane_w)

    if lane_steps == 1:
        grid = (row_steps,)
        in_specs = [pl.BlockSpec((1, lane_w), lambda r: (0, 0))]
        out_specs = pl.BlockSpec((ts, lane_w), lambda r: (r, 0))
        dims = ("parallel",)
    else:  # pathologically wide rows: split the lane axis too
        grid = (row_steps, lane_steps)
        in_specs = [pl.BlockSpec((1, tl), lambda r, l: (0, l))]
        out_specs = pl.BlockSpec((ts, tl), lambda r, l: (r, l))
        dims = ("parallel", "parallel")

    out_folded = pl.pallas_call(
        _broadcast_row_kernel,
        out_shape=jax.ShapeDtypeStruct((n_rows, lane_w), out_dtype),
        grid_spec=pl.GridSpec(grid=grid, in_specs=in_specs, out_specs=out_specs),
        compiler_params=pltpu.CompilerParams(
            dimension_semantics=dims,        # shard writeback over both TCs (v7x)
            vmem_limit_bytes=32 * 1024 * 1024),
    )(row)

    return out_folded.reshape(n_rows * fold, d_model)[:seq_len]


# Pure-JAX reference (matches the PyTorch forward)
def token_type_embeddings_ref(embeddings, token_type, table, out_dtype=None):
    seq_len = embeddings.shape[1]
    tid = TYPE2ID[token_type]
    out = jnp.broadcast_to(table[tid], (seq_len, table.shape[1]))
    return out.astype(out_dtype) if out_dtype is not None else out


if __name__ == "__main__":
    key = jax.random.PRNGKey(0)
    k_tbl, k_x = jax.random.split(key)

    # Small shape consistent with the module: batch=2, seq=8, hidden=32, 3 types.
    d_model = 32
    token_type_num = 3
    table = make_token_type_embedding_table(token_type_num, d_model, k_tbl)
    x = jax.random.normal(k_x, (2, 8, d_model), dtype=jnp.float32)

    out = jax.block_until_ready(
        token_type_embeddings_forward(x, 'segment', table, force_pallas=True))
    ref = token_type_embeddings_ref(x, 'segment', table)
    assert out.shape == (8, d_model)
    np.testing.assert_allclose(np.asarray(out), np.asarray(ref), rtol=1e-6, atol=1e-6)

    # Larger shape: lane-fold (96 -> 384-lane stores), big-block parallel grid, f32.
    d2 = 96
    table2 = make_token_type_embedding_table(token_type_num, d2, k_tbl)
    x2 = jax.random.normal(k_x, (1, 8192, d2), dtype=jnp.float32)
    out2 = jax.block_until_ready(token_type_embeddings_forward(x2, 'question', table2))
    ref2 = token_type_embeddings_ref(x2, 'question', table2)
    assert out2.shape == (8192, d2)
    np.testing.assert_allclose(np.asarray(out2), np.asarray(ref2), rtol=1e-6, atol=1e-6)

    # bf16 output (halves HBM write bytes on this write-bound kernel).
    out2b = jax.block_until_ready(
        token_type_embeddings_forward(x2, 'question', table2,
                                      out_dtype=jnp.bfloat16, force_pallas=True))
    ref2b = token_type_embeddings_ref(x2, 'question', table2, out_dtype=jnp.bfloat16)
    np.testing.assert_allclose(np.asarray(out2b, dtype=np.float32),
                               np.asarray(ref2b, dtype=np.float32),
                               rtol=1e-2, atol=1e-2)

    # seq not divisible by the fold factor: padded rows are sliced off (no masked stores).
    x3 = jax.random.normal(k_x, (1, 1000, d2), dtype=jnp.float32)
    out3 = jax.block_until_ready(
        token_type_embeddings_forward(x3, 'object', table2, force_pallas=True))
    ref3 = token_type_embeddings_ref(x3, 'object', table2)
    assert out3.shape == (1000, d2)
    np.testing.assert_allclose(np.asarray(out3), np.asarray(ref3), rtol=1e-6, atol=1e-6)

    # Tiny-output fallback path (no pallas_call launched).
    out4 = jax.block_until_ready(token_type_embeddings_forward(x, 'object', table))
    np.testing.assert_allclose(
        np.asarray(out4), np.asarray(token_type_embeddings_ref(x, 'object', table)),
        rtol=1e-6, atol=1e-6)

    print("KERNEL_OK")
</pallas_src>

<mosaic_0001>
module attributes {stable_mosaic.version = 11 : i64} {
  func.func @_broadcast_row_kernel(%arg0: i32, %arg1: memref<1x128xf32, #tpu.memory_space<vmem>>, %arg2: memref<8x128xf32, #tpu.memory_space<vmem>>) attributes {dimension_semantics = [#tpu.dimension_semantics<parallel>], iteration_bounds = array<i64: 1>, scalar_prefetch = 0 : i64, scratch_operands = 0 : i64, tpu.core_type = #tpu.core_type<tc>, window_params = [{pipeline_mode = #tpu.pipeline_mode<synchronous>, transform_indices = @transform_0, window_bounds = array<i64: 1, 128>}, {transform_indices = @transform_1, window_bounds = array<i64: 8, 128>}]} {
    %c0 = arith.constant 0 : index
    %c0_0 = arith.constant 0 : index
    %0 = vector.load %arg1[%c0, %c0_0] : memref<1x128xf32, #tpu.memory_space<vmem>>, vector<1x128xf32>
    %1 = vector.shape_cast %0 : vector<1x128xf32> to vector<1x128xf32>
    %2 = vector.broadcast %1 : vector<1x128xf32> to vector<8x128xf32>
    %c0_1 = arith.constant 0 : index
    %c0_2 = arith.constant 0 : index
    %3 = vector.load %arg2[%c0_1, %c0_2] : memref<8x128xf32, #tpu.memory_space<vmem>>, vector<8x128xf32>
    tpu.vector_store %arg2[%c0_1, %c0_2], %2 {strides = array<i32>} : memref<8x128xf32, #tpu.memory_space<vmem>>, vector<8x128xf32>,
    return
  }
  func.func @transform_0(%arg0: i32) -> (i32, i32) {
    %c0_i32 = arith.constant 0 : i32
    %c0_i32_0 = arith.constant 0 : i32
    %c0_i32_1 = arith.constant 0 : i32
    return %c0_i32, %c0_i32_0 : i32, i32
  }
  func.func @transform_1(%arg0: i32) -> (i32, i32) {
    %c0_i32 = arith.constant 0 : i32
    %c0_i32_0 = arith.constant 0 : i32
    return %arg0, %c0_i32 : i32, i32
  }
}

</mosaic_0001>

<llo_original>
// kernel: tpu_custom_call.1
$region0: #{tpu_custom_call.1}
  #allocation0 [shape = 'u32[]', space=smem, size = 0x4, offset = 0x4, fixed_abs, tag = 'smem constant byte address 0x4 - core index']
  #allocation1 [shape = 'u32[72,128]{1,0:T(1,128)}', space=vmem, size = 0x9000, scoped, tag = 'internal scratch']
  %s0 = inlined_call_operand.hbm [shape: f32[1,128], index: 0, kind: input, shape index: {}]
  %s1 = inlined_call_operand.hbm [shape: f32[8,128], index: 1, kind: output, shape index: {}]
  %s2 = sld [smem:[#allocation0]]
  $region18: #{tpu_custom_call.1} parent=0
    _
  %s4 = ssub.s32 1, %s2
  %s5 = scalar_select 0, %s4, %s2
  $region1: #{tpu_custom_call.1} parent=0
    #allocation2 [shape = 'u8[512]{0}', space=vmem, size = 0x400, scoped, tag = 'input window, operand 0, single buffered']
    #allocation3 [shape = 's32[1]{0}', space=sflag, size = 0x4, scoped, tag = 'scoped memory for tpu_custom_call.1']
    #allocation4 [shape = 's32[1]{0}', space=sflag, size = 0x4, scoped, tag = 'scoped memory for tpu_custom_call.1']
    #allocation5 [shape = 'u8[4096]{0}', space=vmem, size = 0x1000, scoped, tag = 'output window, operand 0, single buffered']
    %6 = vsyncpa [#allocation3], 0
    %7 = vsyncpa [#allocation4], 0
    // Predicated region
    $region2: #{tpu_custom_call.1} parent=1 // pred_check
      _
    $region3: #{tpu_custom_call.1} parent=1 // pred_check_branch
      %9 = sbr.rel (0) target = $region5
    $region4: #{tpu_custom_call.1} parent=1 // pred_region
      %11 = vsyncadd [#allocation3], 0
      %s13 = sshll.u32 %s0, 4
      %s14 = int_to_ptr.hbm [resolvable:$true] %s13
      %s15 = sshll.u32 [#allocation2], 4
      %s16 = int_to_ptr.vmem [resolvable:$true] %s15
      %18 = dma.hbm_to_vmem [thread:$0]  %s14, 16, %s16, [#allocation3]
    $region5: #{tpu_custom_call.1} parent=1 // pred_fallthru
      _
    // Predicated region
    $region6: #{tpu_custom_call.1} parent=1 // pred_check
      _
    $region7: #{tpu_custom_call.1} parent=1 // pred_check_branch
      %20 = sbr.rel (0) target = $region9
    $region8: #{tpu_custom_call.1} parent=1 // pred_region
      %22 = dma.done [#allocation3], 16
    $region9: #{tpu_custom_call.1} parent=1 // pred_fallthru
      _
    %v23 = vld [vmem:[#allocation2] sm:$0x1]
    %v25 = vperm.slane %v23, 0
    %27 = vst [vmem:[#allocation5] sm:$0xff] %v25
    // Predicated region
    $region10: #{tpu_custom_call.1} parent=1 // pred_check
      _
    $region11: #{tpu_custom_call.1} parent=1 // pred_check_branch
      %29 = sbr.rel (0) target = $region13
    $region12: #{tpu_custom_call.1} parent=1 // pred_region
      %31 = vsyncadd [#allocation4], 0
      %s33 = sshll.u32 [#allocation5], 4
      %s34 = int_to_ptr.vmem [resolvable:$true] %s33
      %s35 = sshll.u32 %s1, 4
      %s36 = int_to_ptr.hbm [resolvable:$true] %s35
      %38 = dma.vmem_to_hbm [thread:$0]  %s34, 128, %s36, [#allocation4]
    $region13: #{tpu_custom_call.1} parent=1 // pred_fallthru
      _
    // Predicated region
    $region14: #{tpu_custom_call.1} parent=1 // pred_check
      _
    $region15: #{tpu_custom_call.1} parent=1 // pred_check_branch
      %40 = sbr.rel (0) target = $region17
    $region16: #{tpu_custom_call.1} parent=1 // pred_region
      %42 = dma.done [#allocation4], 128
    $region17: #{tpu_custom_call.1} parent=1 // pred_fallthru
      _
    %43 = vsyncpa [#allocation3], 1
    %44 = vsyncpa [#allocation4], 1

</llo_original>
